<compile_context>
chip_gen: v7x
topology: tpu7x:2x2x1
jax: 0.10.0
libtpu: 0.0.40
codegen_flags: <defaults>
</compile_context>

<pallas_src>
import functools

import jax
import jax.numpy as jnp
from jax.experimental import pallas as pl
from jax.experimental.pallas import tpu as pltpu


def _spatial_attention_kernel(x_ref, w_ref, o_ref, sum_ref, max_ref,
                              *, C, Ct, H, W, Bt):
    # x_ref  : (Bt, Ct, HW) VMEM   -- lane-dense input block
    # w_ref  : (18,)        SMEM   -- conv weight, scalar reads
    # o_ref  : (Bt, 1, HW)  VMEM   -- lane-dense output block
    # sum_ref: (Bt, HW) f32 VMEM scratch -- running channel sum
    # max_ref: (Bt, HW) f32 VMEM scratch -- running channel max
    HW = H * W
    k = pl.program_id(1)
    nk = pl.num_programs(1)

    x = x_ref[...]                                   # (Bt, Ct, HW), input dtype

    if C % Ct != 0:
        # Mask out padded channels of the last (partial) channel block.
        ch = jax.lax.broadcasted_iota(jnp.int32, (Bt, Ct, HW), 1) + k * Ct
        valid = ch < C
        x_sum_in = jnp.where(valid, x.astype(jnp.float32), 0.0)
        x_max_in = jnp.where(valid, x, jnp.array(-jnp.inf, x.dtype))
    else:
        x_sum_in = x.astype(jnp.float32)             # f32 accumulation for the mean
        x_max_in = x                                 # max stays in input dtype

    psum = jnp.sum(x_sum_in, axis=1)                          # (Bt, HW) f32
    pmax = jnp.max(x_max_in, axis=1).astype(jnp.float32)      # (Bt, HW) f32

    @pl.when(k == 0)
    def _():
        sum_ref[...] = jnp.zeros_like(sum_ref)
        max_ref[...] = jnp.full_like(max_ref, -jnp.inf)

    sum_ref[...] = sum_ref[...] + psum
    max_ref[...] = jnp.maximum(max_ref[...], pmax)

    @pl.when(k == nk - 1)
    def _():
        # Mean as sum * (1/C): single VPU multiply by a compile-time constant.
        avg = sum_ref[...] * (1.0 / C)               # (Bt, HW) f32
        mx = max_ref[...]                            # (Bt, HW) f32

        # Zero halo of W+1 lanes on each side of the flattened plane.  This
        # makes every out-of-image *row* access land in zeros; out-of-image
        # *column* accesses (wrap into the neighbouring row) are masked below.
        P = W + 1
        zpad = jnp.zeros((Bt, P), jnp.float32)
        planes = (jnp.concatenate([zpad, avg, zpad], axis=1),   # (Bt, HW + 2P)
                  jnp.concatenate([zpad, mx, zpad], axis=1))

        # Column-boundary masks, hoisted above the 2x3x3 tap loop.
        col = jax.lax.broadcasted_iota(jnp.int32, (Bt, HW), 1) % W
        m_left = col >= 1            # tapping column j-1 is valid
        m_right = col <= (W - 2)     # tapping column j+1 is valid

        acc = jnp.zeros((Bt, HW), jnp.float32)
        for ci in range(2):                          # [avg, max] channels
            padded = planes[ci]
            for ki in range(3):
                for kj in range(3):
                    di, dj = ki - 1, kj - 1
                    s = di * W + dj                  # flat shift of this tap
                    tap = padded[:, P + s:P + s + HW]
                    if dj == -1:
                        tap = jnp.where(m_left, tap, 0.0)
                    elif dj == 1:
                        tap = jnp.where(m_right, tap, 0.0)
                    # Scalar weight from SMEM -> scalar*vector broadcast.
                    acc = acc + w_ref[ci * 9 + ki * 3 + kj] * tap

        o_ref[:, 0, :] = jax.nn.sigmoid(acc).astype(o_ref.dtype)


def spatial_attention(x, weight):
    """x: (B, C, H, W), weight: (1, 2, 3, 3). Returns (B, 1, H, W)."""
    B, C, H, W = x.shape
    HW = H * W
    assert weight.shape == (1, 2, 3, 3)

    # Lane-dense views (free, contiguous reshapes).
    x_flat = x.reshape(B, C, HW)
    w_flat = weight.astype(jnp.float32).reshape(18)      # -> SMEM scalars

    itemsize = jnp.dtype(x.dtype).itemsize

    # Batch tile: amortize the ~0.35us/step grid overhead while still exposing
    # >=2 parallel blocks (v7x has 2 TensorCores).
    if B <= 1:
        Bt = 1
    else:
        Bt = min(8, max(1, (B + 1) // 2))

    # Bound the double-buffered input block to ~4 MiB per buffer.
    budget = 4 * 1024 * 1024
    while Bt > 1 and Bt * HW * itemsize > budget:
        Bt = max(1, Bt // 2)
    ct = max(1, budget // max(1, Bt * HW * itemsize))
    if ct >= C:
        Ct = C                                   # full channel dim -> no masking
    else:
        Ct = max(8, (ct // 8) * 8)               # sublane dim must be 8-aligned

    nb = pl.cdiv(B, Bt)
    nk = pl.cdiv(C, Ct)

    kernel = functools.partial(
        _spatial_attention_kernel, C=C, Ct=Ct, H=H, W=W, Bt=Bt)

    out_flat = pl.pallas_call(
        kernel,
        out_shape=jax.ShapeDtypeStruct((B, 1, HW), x.dtype),
        grid_spec=pltpu.PrefetchScalarGridSpec(
            num_scalar_prefetch=0,
            grid=(nb, nk),
            in_specs=[
                pl.BlockSpec((Bt, Ct, HW), lambda b, k: (b, k, 0)),
                pl.BlockSpec(memory_space=pltpu.MemorySpace.SMEM),
            ],
            out_specs=pl.BlockSpec((Bt, 1, HW), lambda b, k: (b, 0, 0)),
            scratch_shapes=[
                pltpu.VMEM((Bt, HW), jnp.float32),   # running channel sum
                pltpu.VMEM((Bt, HW), jnp.float32),   # running channel max
            ],
        ),
        compiler_params=pltpu.CompilerParams(
            dimension_semantics=("parallel", "arbitrary"),
            vmem_limit_bytes=40 * 1024 * 1024,
        ),
    )(x_flat, w_flat)

    return out_flat.reshape(B, 1, H, W)


def _reference(x, weight):
    """Pure-JAX reference mirroring the PyTorch forward."""
    avg = jnp.mean(x, axis=1, keepdims=True)
    mx = jnp.max(x, axis=1, keepdims=True)
    cat = jnp.concatenate([avg, mx], axis=1)             # (B, 2, H, W)
    y = jax.lax.conv_general_dilated(
        cat.astype(jnp.float32), weight.astype(jnp.float32),
        window_strides=(1, 1), padding=((1, 1), (1, 1)),
        dimension_numbers=("NCHW", "OIHW", "NCHW"))
    return jax.nn.sigmoid(y).astype(x.dtype)


if __name__ == "__main__":
    key = jax.random.PRNGKey(0)
    kx, kw = jax.random.split(key)

    B, C, H, W = 2, 4, 16, 16
    x = jax.random.normal(kx, (B, C, H, W), dtype=jnp.float32)
    # Deterministic weight init (stand-in for PyTorch's kaiming-uniform).
    weight = 0.1 * jax.random.normal(kw, (1, 2, 3, 3), dtype=jnp.float32)

    out = spatial_attention(x, weight)
    out = jax.block_until_ready(out)

    ref = _reference(x, weight)
    assert out.shape == (B, 1, H, W)
    assert jnp.allclose(out, ref, atol=1e-5, rtol=1e-5), "mismatch vs reference"

    print("KERNEL_OK")
</pallas_src>

<mosaic_0001>
module attributes {stable_mosaic.version = 11 : i64} {
  func.func @_spatial_attention_kernel(%arg0: i32, %arg1: i32, %arg2: memref<1x4x256xf32, #tpu.memory_space<vmem>>, %arg3: memref<18xf32, #tpu.memory_space<smem>>, %arg4: memref<1x1x256xf32, #tpu.memory_space<vmem>>, %arg5: memref<1x256xf32, #tpu.memory_space<vmem>>, %arg6: memref<1x256xf32, #tpu.memory_space<vmem>>) attributes {dimension_semantics = [#tpu.dimension_semantics<parallel>, #tpu.dimension_semantics<arbitrary>], iteration_bounds = array<i64: 2, 1>, scalar_prefetch = 0 : i64, scratch_operands = 2 : i64, tpu.core_type = #tpu.core_type<tc>, window_params = [{transform_indices = @transform_0, window_bounds = array<i64: 1, 4, 256>}, {transform_indices = @transform_1, window_bounds = array<i64: 18>}, {transform_indices = @transform_2, window_bounds = array<i64: 1, 1, 256>}]} {
    %c0 = arith.constant 0 : index
    %c0_0 = arith.constant 0 : index
    %c0_1 = arith.constant 0 : index
    %0 = vector.load %arg2[%c0, %c0_0, %c0_1] : memref<1x4x256xf32, #tpu.memory_space<vmem>>, vector<1x4x256xf32>
    %cst = arith.constant dense<0.000000e+00> : vector<1x256xf32>
    %1 = vector.multi_reduction <add>, %0, %cst [1] : vector<1x4x256xf32> to vector<1x256xf32>
    %cst_2 = arith.constant dense<0xFF800000> : vector<1x256xf32>
    %2 = vector.multi_reduction <maximumf>, %0, %cst_2 [1] : vector<1x4x256xf32> to vector<1x256xf32>
    %c0_i32 = arith.constant 0 : i32
    %3 = arith.cmpi eq, %arg1, %c0_i32 : i32
    %4 = arith.extui %3 : i1 to i32
    %c0_i32_3 = arith.constant 0 : i32
    %5 = arith.cmpi ne, %4, %c0_i32_3 : i32
    scf.if %5 {
      %cst_14 = arith.constant 0.000000e+00 : f32
      %15 = vector.broadcast %cst_14 : f32 to vector<1x256xf32>
      %c0_15 = arith.constant 0 : index
      %c0_16 = arith.constant 0 : index
      %16 = vector.load %arg5[%c0_15, %c0_16] : memref<1x256xf32, #tpu.memory_space<vmem>>, vector<1x256xf32>
      tpu.vector_store %arg5[%c0_15, %c0_16], %15 {strides = array<i32>} : memref<1x256xf32, #tpu.memory_space<vmem>>, vector<1x256xf32>,
      %cst_17 = arith.constant 0xFF800000 : f32
      %17 = vector.broadcast %cst_17 : f32 to vector<1x256xf32>
      %c0_18 = arith.constant 0 : index
      %c0_19 = arith.constant 0 : index
      %18 = vector.load %arg6[%c0_18, %c0_19] : memref<1x256xf32, #tpu.memory_space<vmem>>, vector<1x256xf32>
      tpu.vector_store %arg6[%c0_18, %c0_19], %17 {strides = array<i32>} : memref<1x256xf32, #tpu.memory_space<vmem>>, vector<1x256xf32>,
    } else {
    }
    %c0_4 = arith.constant 0 : index
    %c0_5 = arith.constant 0 : index
    %6 = vector.load %arg5[%c0_4, %c0_5] : memref<1x256xf32, #tpu.memory_space<vmem>>, vector<1x256xf32>
    %7 = arith.addf %6, %1 : vector<1x256xf32>
    %c0_6 = arith.constant 0 : index
    %c0_7 = arith.constant 0 : index
    %8 = vector.load %arg5[%c0_6, %c0_7] : memref<1x256xf32, #tpu.memory_space<vmem>>, vector<1x256xf32>
    tpu.vector_store %arg5[%c0_6, %c0_7], %7 {strides = array<i32>} : memref<1x256xf32, #tpu.memory_space<vmem>>, vector<1x256xf32>,
    %c0_8 = arith.constant 0 : index
    %c0_9 = arith.constant 0 : index
    %9 = vector.load %arg6[%c0_8, %c0_9] : memref<1x256xf32, #tpu.memory_space<vmem>>, vector<1x256xf32>
    %10 = arith.maximumf %9, %2 : vector<1x256xf32>
    %c0_10 = arith.constant 0 : index
    %c0_11 = arith.constant 0 : index
    %11 = vector.load %arg6[%c0_10, %c0_11] : memref<1x256xf32, #tpu.memory_space<vmem>>, vector<1x256xf32>
    tpu.vector_store %arg6[%c0_10, %c0_11], %10 {strides = array<i32>} : memref<1x256xf32, #tpu.memory_space<vmem>>, vector<1x256xf32>,
    %c0_i32_12 = arith.constant 0 : i32
    %12 = arith.cmpi eq, %arg1, %c0_i32_12 : i32
    %13 = arith.extui %12 : i1 to i32
    %c0_i32_13 = arith.constant 0 : i32
    %14 = arith.cmpi ne, %13, %c0_i32_13 : i32
    scf.if %14 {
      %c0_14 = arith.constant 0 : index
      %c0_15 = arith.constant 0 : index
      %15 = vector.load %arg5[%c0_14, %c0_15] : memref<1x256xf32, #tpu.memory_space<vmem>>, vector<1x256xf32>
      %cst_16 = arith.constant 2.500000e-01 : f32
      %16 = vector.broadcast %cst_16 : f32 to vector<1x256xf32>
      %17 = arith.mulf %15, %16 : vector<1x256xf32>
      %c0_17 = arith.constant 0 : index
      %c0_18 = arith.constant 0 : index
      %18 = vector.load %arg6[%c0_17, %c0_18] : memref<1x256xf32, #tpu.memory_space<vmem>>, vector<1x256xf32>
      %cst_19 = arith.constant 0.000000e+00 : f32
      %19 = vector.broadcast %cst_19 : f32 to vector<1x17xf32>
      %20 = tpu.concatenate %19, %17, %19 in 1 : vector<1x17xf32>, vector<1x256xf32>, vector<1x17xf32> -> vector<1x290xf32>
      %21 = tpu.concatenate %19, %18, %19 in 1 : vector<1x17xf32>, vector<1x256xf32>, vector<1x17xf32> -> vector<1x290xf32>
      %22 = tpu.iota {dimensions = array<i32: 1>} : vector<1x256xi32>
      %c16_i32 = arith.constant 16 : i32
      %c0_i32_20 = arith.constant 0 : i32
      %23 = arith.cmpi eq, %c16_i32, %c0_i32_20 : i32
      %c1_i32 = arith.constant 1 : i32
      %24 = arith.select %23, %c1_i32, %c16_i32 : i32
      %25 = vector.broadcast %24 : i32 to vector<1x256xi32>
      %26 = arith.remsi %22, %25 : vector<1x256xi32>
      %c0_i32_21 = arith.constant 0 : i32
      %27 = vector.broadcast %c0_i32_21 : i32 to vector<1x256xi32>
      %28 = arith.cmpi ne, %26, %27 : vector<1x256xi32>
      %c0_i32_22 = arith.constant 0 : i32
      %29 = vector.broadcast %c0_i32_22 : i32 to vector<1x256xi32>
      %30 = arith.cmpi slt, %26, %29 : vector<1x256xi32>
      %c0_i32_23 = arith.constant 0 : i32
      %31 = arith.cmpi slt, %24, %c0_i32_23 : i32
      %32 = vector.broadcast %31 : i1 to vector<1x256xi1>
      %33 = vector.broadcast %32 : vector<1x256xi1> to vector<1x256xi1>
      %34 = arith.xori %30, %33 : vector<1x256xi1>
      %35 = arith.andi %34, %28 : vector<1x256xi1>
      %36 = vector.broadcast %24 : i32 to vector<1x256xi32>
      %37 = arith.addi %26, %36 : vector<1x256xi32>
      %38 = arith.select %35, %37, %26 : vector<1x256xi1>, vector<1x256xi32>
      %c1_i32_24 = arith.constant 1 : i32
      %39 = vector.broadcast %c1_i32_24 : i32 to vector<1x256xi32>
      %40 = arith.cmpi sge, %38, %39 : vector<1x256xi32>
      %c14_i32 = arith.constant 14 : i32
      %41 = vector.broadcast %c14_i32 : i32 to vector<1x256xi32>
      %42 = arith.cmpi sle, %38, %41 : vector<1x256xi32>
      %cst_25 = arith.constant 0.000000e+00 : f32
      %43 = vector.broadcast %cst_25 : f32 to vector<1x256xf32>
      %44 = vector.extract_strided_slice %20 {offsets = [0, 0], sizes = [1, 256], strides = [1, 1]} : vector<1x290xf32> to vector<1x256xf32>
      %cst_26 = arith.constant 0.000000e+00 : f32
      %45 = vector.broadcast %cst_26 : f32 to vector<1x256xf32>
      %46 = arith.select %40, %44, %45 : vector<1x256xi1>, vector<1x256xf32>
      %c0_27 = arith.constant 0 : index
      %47 = memref.load %arg3[%c0_27] : memref<18xf32, #tpu.memory_space<smem>>
      %48 = vector.broadcast %47 : f32 to vector<1x256xf32>
      %49 = arith.mulf %48, %46 : vector<1x256xf32>
      %50 = arith.addf %43, %49 : vector<1x256xf32>
      %51 = vector.extract_strided_slice %20 {offsets = [0, 1], sizes = [1, 256], strides = [1, 1]} : vector<1x290xf32> to vector<1x256xf32>
      %c1 = arith.constant 1 : index
      %52 = memref.load %arg3[%c1] : memref<18xf32, #tpu.memory_space<smem>>
      %53 = vector.broadcast %52 : f32 to vector<1x256xf32>
      %54 = arith.mulf %53, %51 : vector<1x256xf32>
      %55 = arith.addf %50, %54 : vector<1x256xf32>
      %56 = vector.extract_strided_slice %20 {offsets = [0, 2], sizes = [1, 256], strides = [1, 1]} : vector<1x290xf32> to vector<1x256xf32>
      %cst_28 = arith.constant 0.000000e+00 : f32
      %57 = vector.broadcast %cst_28 : f32 to vector<1x256xf32>
      %58 = arith.select %42, %56, %57 : vector<1x256xi1>, vector<1x256xf32>
      %c2 = arith.constant 2 : index
      %59 = memref.load %arg3[%c2] : memref<18xf32, #tpu.memory_space<smem>>
      %60 = vector.broadcast %59 : f32 to vector<1x256xf32>
      %61 = arith.mulf %60, %58 : vector<1x256xf32>
      %62 = arith.addf %55, %61 : vector<1x256xf32>
      %63 = vector.extract_strided_slice %20 {offsets = [0, 16], sizes = [1, 256], strides = [1, 1]} : vector<1x290xf32> to vector<1x256xf32>
      %cst_29 = arith.constant 0.000000e+00 : f32
      %64 = vector.broadcast %cst_29 : f32 to vector<1x256xf32>
      %65 = arith.select %40, %63, %64 : vector<1x256xi1>, vector<1x256xf32>
      %c3 = arith.constant 3 : index
      %66 = memref.load %arg3[%c3] : memref<18xf32, #tpu.memory_space<smem>>
      %67 = vector.broadcast %66 : f32 to vector<1x256xf32>
      %68 = arith.mulf %67, %65 : vector<1x256xf32>
      %69 = arith.addf %62, %68 : vector<1x256xf32>
      %70 = vector.extract_strided_slice %20 {offsets = [0, 17], sizes = [1, 256], strides = [1, 1]} : vector<1x290xf32> to vector<1x256xf32>
      %c4 = arith.constant 4 : index
      %71 = memref.load %arg3[%c4] : memref<18xf32, #tpu.memory_space<smem>>
      %72 = vector.broadcast %71 : f32 to vector<1x256xf32>
      %73 = arith.mulf %72, %70 : vector<1x256xf32>
      %74 = arith.addf %69, %73 : vector<1x256xf32>
      %75 = vector.extract_strided_slice %20 {offsets = [0, 18], sizes = [1, 256], strides = [1, 1]} : vector<1x290xf32> to vector<1x256xf32>
      %cst_30 = arith.constant 0.000000e+00 : f32
      %76 = vector.broadcast %cst_30 : f32 to vector<1x256xf32>
      %77 = arith.select %42, %75, %76 : vector<1x256xi1>, vector<1x256xf32>
      %c5 = arith.constant 5 : index
      %78 = memref.load %arg3[%c5] : memref<18xf32, #tpu.memory_space<smem>>
      %79 = vector.broadcast %78 : f32 to vector<1x256xf32>
      %80 = arith.mulf %79, %77 : vector<1x256xf32>
      %81 = arith.addf %74, %80 : vector<1x256xf32>
      %82 = vector.extract_strided_slice %20 {offsets = [0, 32], sizes = [1, 256], strides = [1, 1]} : vector<1x290xf32> to vector<1x256xf32>
      %cst_31 = arith.constant 0.000000e+00 : f32
      %83 = vector.broadcast %cst_31 : f32 to vector<1x256xf32>
      %84 = arith.select %40, %82, %83 : vector<1x256xi1>, vector<1x256xf32>
      %c6 = arith.constant 6 : index
      %85 = memref.load %arg3[%c6] : memref<18xf32, #tpu.memory_space<smem>>
      %86 = vector.broadcast %85 : f32 to vector<1x256xf32>
      %87 = arith.mulf %86, %84 : vector<1x256xf32>
      %88 = arith.addf %81, %87 : vector<1x256xf32>
      %89 = vector.extract_strided_slice %20 {offsets = [0, 33], sizes = [1, 256], strides = [1, 1]} : vector<1x290xf32> to vector<1x256xf32>
      %c7 = arith.constant 7 : index
      %90 = memref.load %arg3[%c7] : memref<18xf32, #tpu.memory_space<smem>>
      %91 = vector.broadcast %90 : f32 to vector<1x256xf32>
      %92 = arith.mulf %91, %89 : vector<1x256xf32>
      %93 = arith.addf %88, %92 : vector<1x256xf32>
      %94 = vector.extract_strided_slice %20 {offsets = [0, 34], sizes = [1, 256], strides = [1, 1]} : vector<1x290xf32> to vector<1x256xf32>
      %cst_32 = arith.constant 0.000000e+00 : f32
      %95 = vector.broadcast %cst_32 : f32 to vector<1x256xf32>
      %96 = arith.select %42, %94, %95 : vector<1x256xi1>, vector<1x256xf32>
      %c8 = arith.constant 8 : index
      %97 = memref.load %arg3[%c8] : memref<18xf32, #tpu.memory_space<smem>>
      %98 = vector.broadcast %97 : f32 to vector<1x256xf32>
      %99 = arith.mulf %98, %96 : vector<1x256xf32>
      %100 = arith.addf %93, %99 : vector<1x256xf32>
      %101 = vector.extract_strided_slice %21 {offsets = [0, 0], sizes = [1, 256], strides = [1, 1]} : vector<1x290xf32> to vector<1x256xf32>
      %cst_33 = arith.constant 0.000000e+00 : f32
      %102 = vector.broadcast %cst_33 : f32 to vector<1x256xf32>
      %103 = arith.select %40, %101, %102 : vector<1x256xi1>, vector<1x256xf32>
      %c9 = arith.constant 9 : index
      %104 = memref.load %arg3[%c9] : memref<18xf32, #tpu.memory_space<smem>>
      %105 = vector.broadcast %104 : f32 to vector<1x256xf32>
      %106 = arith.mulf %105, %103 : vector<1x256xf32>
      %107 = arith.addf %100, %106 : vector<1x256xf32>
      %108 = vector.extract_strided_slice %21 {offsets = [0, 1], sizes = [1, 256], strides = [1, 1]} : vector<1x290xf32> to vector<1x256xf32>
      %c10 = arith.constant 10 : index
      %109 = memref.load %arg3[%c10] : memref<18xf32, #tpu.memory_space<smem>>
      %110 = vector.broadcast %109 : f32 to vector<1x256xf32>
      %111 = arith.mulf %110, %108 : vector<1x256xf32>
      %112 = arith.addf %107, %111 : vector<1x256xf32>
      %113 = vector.extract_strided_slice %21 {offsets = [0, 2], sizes = [1, 256], strides = [1, 1]} : vector<1x290xf32> to vector<1x256xf32>
      %cst_34 = arith.constant 0.000000e+00 : f32
      %114 = vector.broadcast %cst_34 : f32 to vector<1x256xf32>
      %115 = arith.select %42, %113, %114 : vector<1x256xi1>, vector<1x256xf32>
      %c11 = arith.constant 11 : index
      %116 = memref.load %arg3[%c11] : memref<18xf32, #tpu.memory_space<smem>>
      %117 = vector.broadcast %116 : f32 to vector<1x256xf32>
      %118 = arith.mulf %117, %115 : vector<1x256xf32>
      %119 = arith.addf %112, %118 : vector<1x256xf32>
      %120 = vector.extract_strided_slice %21 {offsets = [0, 16], sizes = [1, 256], strides = [1, 1]} : vector<1x290xf32> to vector<1x256xf32>
      %cst_35 = arith.constant 0.000000e+00 : f32
      %121 = vector.broadcast %cst_35 : f32 to vector<1x256xf32>
      %122 = arith.select %40, %120, %121 : vector<1x256xi1>, vector<1x256xf32>
      %c12 = arith.constant 12 : index
      %123 = memref.load %arg3[%c12] : memref<18xf32, #tpu.memory_space<smem>>
      %124 = vector.broadcast %123 : f32 to vector<1x256xf32>
      %125 = arith.mulf %124, %122 : vector<1x256xf32>
      %126 = arith.addf %119, %125 : vector<1x256xf32>
      %127 = vector.extract_strided_slice %21 {offsets = [0, 17], sizes = [1, 256], strides = [1, 1]} : vector<1x290xf32> to vector<1x256xf32>
      %c13 = arith.constant 13 : index
      %128 = memref.load %arg3[%c13] : memref<18xf32, #tpu.memory_space<smem>>
      %129 = vector.broadcast %128 : f32 to vector<1x256xf32>
      %130 = arith.mulf %129, %127 : vector<1x256xf32>
      %131 = arith.addf %126, %130 : vector<1x256xf32>
      %132 = vector.extract_strided_slice %21 {offsets = [0, 18], sizes = [1, 256], strides = [1, 1]} : vector<1x290xf32> to vector<1x256xf32>
      %cst_36 = arith.constant 0.000000e+00 : f32
      %133 = vector.broadcast %cst_36 : f32 to vector<1x256xf32>
      %134 = arith.select %42, %132, %133 : vector<1x256xi1>, vector<1x256xf32>
      %c14 = arith.constant 14 : index
      %135 = memref.load %arg3[%c14] : memref<18xf32, #tpu.memory_space<smem>>
      %136 = vector.broadcast %135 : f32 to vector<1x256xf32>
      %137 = arith.mulf %136, %134 : vector<1x256xf32>
      %138 = arith.addf %131, %137 : vector<1x256xf32>
      %139 = vector.extract_strided_slice %21 {offsets = [0, 32], sizes = [1, 256], strides = [1, 1]} : vector<1x290xf32> to vector<1x256xf32>
      %cst_37 = arith.constant 0.000000e+00 : f32
      %140 = vector.broadcast %cst_37 : f32 to vector<1x256xf32>
      %141 = arith.select %40, %139, %140 : vector<1x256xi1>, vector<1x256xf32>
      %c15 = arith.constant 15 : index
      %142 = memref.load %arg3[%c15] : memref<18xf32, #tpu.memory_space<smem>>
      %143 = vector.broadcast %142 : f32 to vector<1x256xf32>
      %144 = arith.mulf %143, %141 : vector<1x256xf32>
      %145 = arith.addf %138, %144 : vector<1x256xf32>
      %146 = vector.extract_strided_slice %21 {offsets = [0, 33], sizes = [1, 256], strides = [1, 1]} : vector<1x290xf32> to vector<1x256xf32>
      %c16 = arith.constant 16 : index
      %147 = memref.load %arg3[%c16] : memref<18xf32, #tpu.memory_space<smem>>
      %148 = vector.broadcast %147 : f32 to vector<1x256xf32>
      %149 = arith.mulf %148, %146 : vector<1x256xf32>
      %150 = arith.addf %145, %149 : vector<1x256xf32>
      %151 = vector.extract_strided_slice %21 {offsets = [0, 34], sizes = [1, 256], strides = [1, 1]} : vector<1x290xf32> to vector<1x256xf32>
      %cst_38 = arith.constant 0.000000e+00 : f32
      %152 = vector.broadcast %cst_38 : f32 to vector<1x256xf32>
      %153 = arith.select %42, %151, %152 : vector<1x256xi1>, vector<1x256xf32>
      %c17 = arith.constant 17 : index
      %154 = memref.load %arg3[%c17] : memref<18xf32, #tpu.memory_space<smem>>
      %155 = vector.broadcast %154 : f32 to vector<1x256xf32>
      %156 = arith.mulf %155, %153 : vector<1x256xf32>
      %157 = arith.addf %150, %156 : vector<1x256xf32>
      %158 = arith.negf %157 : vector<1x256xf32>
      %159 = math.exp %158 : vector<1x256xf32>
      %cst_39 = arith.constant 1.000000e+00 : f32
      %160 = vector.broadcast %cst_39 : f32 to vector<1x256xf32>
      %161 = arith.addf %160, %159 : vector<1x256xf32>
      %162 = arith.divf %160, %161 : vector<1x256xf32>
      %c0_40 = arith.constant 0 : index
      %c0_41 = arith.constant 0 : index
      %c0_42 = arith.constant 0 : index
      %163 = vector.load %arg4[%c0_40, %c0_41, %c0_42] : memref<1x1x256xf32, #tpu.memory_space<vmem>>, vector<1x1x256xf32>
      %164 = vector.shape_cast %163 : vector<1x1x256xf32> to vector<1x256xf32>
      %165 = vector.shape_cast %162 : vector<1x256xf32> to vector<1x1x256xf32>
      tpu.vector_store %arg4[%c0_40, %c0_41, %c0_42], %165 {strides = array<i32>} : memref<1x1x256xf32, #tpu.memory_space<vmem>>, vector<1x1x256xf32>,
    } else {
    }
    return
  }
  func.func @transform_0(%arg0: i32, %arg1: i32) -> (i32, i32, i32) {
    %c0_i32 = arith.constant 0 : i32
    %c0_i32_0 = arith.constant 0 : i32
    return %arg0, %arg1, %c0_i32 : i32, i32, i32
  }
  func.func @transform_1(%arg0: i32, %arg1: i32) -> i32 {
    %c0_i32 = arith.constant 0 : i32
    %c0_i32_0 = arith.constant 0 : i32
    return %c0_i32 : i32
  }
  func.func @transform_2(%arg0: i32, %arg1: i32) -> (i32, i32, i32) {
    %c0_i32 = arith.constant 0 : i32
    %c0_i32_0 = arith.constant 0 : i32
    %c0_i32_1 = arith.constant 0 : i32
    return %arg0, %c0_i32, %c0_i32_0 : i32, i32, i32
  }
}

</mosaic_0001>

<llo_original>
// kernel: tpu_custom_call.1
$region0: #{tpu_custom_call.1}
  #allocation0 [shape = 'u32[]', space=smem, size = 0x4, offset = 0x4, fixed_abs, tag = 'smem constant byte address 0x4 - core index']
  #allocation1 [shape = 'u32[144,128]{1,0:T(1,128)}', space=vmem, size = 0x12000, scoped, tag = 'internal scratch']
  #allocation2 [shape = 'f32[1,256]{1,0:T(1,128)}', space=vmem, size = 0x400, scoped, tag = 'scratch operand']
  #allocation3 [shape = 'f32[1,256]{1,0:T(1,128)}', space=vmem, size = 0x400, scoped, tag = 'scratch operand']
  %s0 = inlined_call_operand.hbm [shape: f32[2,4,256], index: 0, kind: input, shape index: {}]
  %s1 = inlined_call_operand.vmem [shape: f32[18], index: 1, kind: input, shape index: {}]
  %s2 = inlined_call_operand.hbm [shape: f32[2,1,256], index: 2, kind: output, shape index: {}]
  %s3 = sld [smem:[#allocation0]]
  $region57: #{tpu_custom_call.1} parent=0
    _
  %s5 = ssub.s32 1, %s3
  %s6 = scalar_select 0, %s5, %s3
  $region1: #{tpu_custom_call.1} parent=0
    #allocation4 [shape = 'u8[8192]{0}', space=vmem, size = 0x2000, scoped, tag = 'input window, operand 0']
    #allocation5 [shape = 's32[2]{0}', space=sflag, size = 0x8, scoped, tag = 'scoped memory for tpu_custom_call.1']
    #allocation6 [shape = 's32[2]{0}', space=sflag, size = 0x8, scoped, tag = 'scoped memory for tpu_custom_call.1']
    #allocation7 [shape = 's32[2]{0}', space=sflag, size = 0x8, scoped, tag = 'scoped memory for tpu_custom_call.1']
    #allocation8 [shape = 'u8[512]{0}', space=smem, size = 0x200, scoped, tag = 'input window, operand 1, single buffered']
    #allocation9 [shape = 'u8[2048]{0}', space=vmem, size = 0x800, scoped, tag = 'output window, operand 0']
    %7 = vsyncpa [#allocation5], 0
    %s8 = scalar_lea.sflag [#allocation5], 1
    %9 = vsyncpa %s8, 0
    %10 = vsyncpa [#allocation7], 0
    %11 = vsyncpa [#allocation6], 0
    %s12 = scalar_lea.sflag [#allocation6], 1
    %13 = vsyncpa %s12, 0
    loop: start=0, step=1, limit=4
    $region2: #{tpu_custom_call.1} parent=1 // loop_pre_header
      _
    $region3: #{tpu_custom_call.1} parent=1 // loop_header
      %s15 = sphi 0, %s19
      %p16 = scmp.ge.s32.totalorder %s15, 4
      %s22 = sphi 0, %s34
      %s23 = sphi 0, %s30
      %s24 = sphi 0, %s22
      %s25 = sphi 0, %s23
      %s26 = sphi 0, %s24
      %s27 = sphi 0, %s25
      %s39 = sphi 0, %s41
      %s42 = sphi 0, %s39
      %s43 = sphi 0, %s42
      %s59 = sphi 0, %s43
      %s63 = sphi 0, %s63
      %s65 = sphi 0, %s63
      %s66 = sphi 0, %s65
      %s80 = sphi 0, %s66
      %s86 = sphi 0, %s88
      %s89 = sphi 0, %s86
      %s90 = sphi 0, %s89
      %s106 = sphi 0, %s90
    $region4: #{tpu_custom_call.1} parent=1 // loop_header_branch
      %18 = sbr.rel (%p16) target = $region8
    $region5: #{tpu_custom_call.1} parent=1 // loop_body
      %s20 = ssub.s32 %s15, 1
      %s21 = ssub.s32 %s15, 2
      %s28 = sadd.s32 1, %s23
      %p29 = scmp.ge.s32.totalorder %s28, 1
      %s30 = scalar_select %p29, 0, %s28
      %s31 = sadd.s32 1, %s22
      %s32 = scalar_select %p29, %s31, %s22
      %p33 = scmp.ge.s32.totalorder %s32, 2
      %s34 = scalar_select %p33, 0, %s32
      %s35 = ssub.s32 %s22, %s34
      %s36 = ssub.s32 %s23, %s30
      %s37 = sor.u32 %s35, %s36
      %p38 = scmp.eq.s32.totalorder %s37, 0
      %s40 = sadd.s32 %s39, 1
      %s41 = scalar_select %p38, %s39, %s40
      %p44 = pneg %p38
      %p45 = scmp.eq.s32.totalorder %s15, 1
      %p46 = por %p44, %p45
      %p47 = scmp.ne.s32.totalorder %s39, %s42
      %p48 = scmp.eq.s32.totalorder %s15, 0
      %p49 = por %p47, %p48
      %p50 = scmp.ne.s32.totalorder %s39, %s42
      %p51 = scmp.eq.s32.totalorder %s20, 1
      %p52 = por %p50, %p51
      %p53 = scmp.ne.s32.totalorder %s42, %s43
      %p54 = scmp.eq.s32.totalorder %s20, 0
      %p55 = por %p53, %p54
      %p56 = scmp.ne.s32.totalorder %s42, %s43
      %p57 = scmp.eq.s32.totalorder %s21, 1
      %p58 = por %p56, %p57
      %p60 = scmp.ne.s32.totalorder %s43, %s59
      %p61 = scmp.eq.s32.totalorder %s21, 0
      %p62 = por %p60, %p61
      %s64 = sadd.s32 %s63, 1
      %p67 = scmp.eq.s32.totalorder %s15, 1
      %p68 = scmp.ne.s32.totalorder %s63, %s65
      %p69 = scmp.eq.s32.totalorder %s15, 0
      %p70 = por %p68, %p69
      %p71 = scmp.ne.s32.totalorder %s63, %s65
      %p72 = scmp.eq.s32.totalorder %s20, 1
      %p73 = por %p71, %p72
      %p74 = scmp.ne.s32.totalorder %s65, %s66
      %p75 = scmp.eq.s32.totalorder %s20, 0
      %p76 = por %p74, %p75
      %p77 = scmp.ne.s32.totalorder %s65, %s66
      %p78 = scmp.eq.s32.totalorder %s21, 1
      %p79 = por %p77, %p78
      %p81 = scmp.ne.s32.totalorder %s66, %s80
      %p82 = scmp.eq.s32.totalorder %s21, 0
      %p83 = por %p81, %p82
      %s84 = ssub.s32 %s22, %s34
      %p85 = scmp.eq.s32.totalorder %s84, 0
      %s87 = sadd.s32 %s86, 1
      %s88 = scalar_select %p85, %s86, %s87
      %p91 = pneg %p85
      %p92 = scmp.eq.s32.totalorder %s15, 1
      %p93 = por %p91, %p92
      %p94 = scmp.ne.s32.totalorder %s86, %s89
      %p95 = scmp.eq.s32.totalorder %s15, 0
      %p96 = por %p94, %p95
      %p97 = scmp.ne.s32.totalorder %s86, %s89
      %p98 = scmp.eq.s32.totalorder %s20, 1
      %p99 = por %p97, %p98
      %p100 = scmp.ne.s32.totalorder %s89, %s90
      %p101 = scmp.eq.s32.totalorder %s20, 0
      %p102 = por %p100, %p101
      %p103 = scmp.ne.s32.totalorder %s89, %s90
      %p104 = scmp.eq.s32.totalorder %s21, 1
      %p105 = por %p103, %p104
      %p107 = scmp.ne.s32.totalorder %s90, %s106
      %p108 = scmp.eq.s32.totalorder %s21, 0
      %p109 = por %p107, %p108
      %p110 = scmp.le.s32.totalorder 1, %s15
      %p111 = scmp.lt.s32.totalorder %s15, 3
      %p112 = pnand %p110, %p111
      %p113 = pneg %p112
      // Predicated region
      $region9: #{tpu_custom_call.1} parent=5 // pred_check
        _
      $region10: #{tpu_custom_call.1} parent=5 // pred_check_branch
        %115 = sbr.rel (%p112) target = $region12
      $region11: #{tpu_custom_call.1} parent=5 // pred_region
        %s116 = ssub.s32 %s15, 1
        // Predicated region
        $region13: #{tpu_custom_call.1} parent=11 // pred_check
          %p117 = pneg %p76
        $region14: #{tpu_custom_call.1} parent=11 // pred_check_branch
          %119 = sbr.rel (%p117) target = $region16
        $region15: #{tpu_custom_call.1} parent=11 // pred_region
          %s121 = ssub.s32 16, 16
          %122 = vsyncadd [#allocation7], %s121
          %s124 = sshll.u32 %s1, 4
          %s125 = int_to_ptr.vmem [resolvable:$true] %s124
          %127 = dma.vmem_to_smem %s125, 16, [#allocation8], [#allocation7]
        $region16: #{tpu_custom_call.1} parent=11 // pred_fallthru
          _
      $region12: #{tpu_custom_call.1} parent=5 // pred_fallthru
        _
      %p128 = scmp.lt.s32.totalorder %s15, 2
      // Predicated region
      $region17: #{tpu_custom_call.1} parent=5 // pred_check
        %p129 = pneg %p128
      $region18: #{tpu_custom_call.1} parent=5 // pred_check_branch
        %131 = sbr.rel (%p129) target = $region20
      $region19: #{tpu_custom_call.1} parent=5 // pred_region
        // Predicated region
        $region21: #{tpu_custom_call.1} parent=19 // pred_check
          %p132 = pneg %p49
        $region22: #{tpu_custom_call.1} parent=19 // pred_check_branch
          %134 = sbr.rel (%p132) target = $region24
        $region23: #{tpu_custom_call.1} parent=19 // pred_region
          %s135 = sand.u32 %s39, 1
          %s136 = scalar_lea.sflag [#allocation5], %s135
          %s137 = sand.u32 %s39, 1
          %s138 = smul.addr %s137, 8
          %s139 = scalar_lea.vmem [#allocation4], %s138
          %s141 = ssub.s32 128, 128
          %142 = vsyncadd %s136, %s141
          %s143 = smul.addr %s23, 2
          %s144 = smul.addr %s22, 2
          %s145 = sadd.s32 %s143, %s144
          %s146 = smul.addr %s145, 64
          %s147 = scalar_lea.hbm %s0, %s146
          %s149 = sshll.u32 %s139, 4
          %s150 = int_to_ptr.vmem [resolvable:$true] %s149
          %152 = dma.hbm_to_vmem [thread:$0]  %s147, 128, %s150, %s136
        $region24: #{tpu_custom_call.1} parent=19 // pred_fallthru
          _
      $region20: #{tpu_custom_call.1} parent=5 // pred_fallthru
        _
      %p153 = scmp.le.s32.totalorder 1, %s15
      %p154 = scmp.lt.s32.totalorder %s15, 3
      %p155 = pnand %p153, %p154
      %p156 = pneg %p155
      // Predicated region
      $region25: #{tpu_custom_call.1} parent=5 // pred_check
        _
      $region26: #{tpu_custom_call.1} parent=5 // pred_check_branch
        %158 = sbr.rel (%p155) target = $region28
      $region27: #{tpu_custom_call.1} parent=5 // pred_region
        %s159 = ssub.s32 %s15, 1
        %s160 = sand.u32 %s42, 1
        %s161 = scalar_lea.sflag [#allocation5], %s160
        %s162 = sand.u32 %s42, 1
        %s163 = smul.addr %s162, 8
        %s164 = scalar_lea.vmem [#allocation4], %s163
        // Predicated region
        $region29: #{tpu_custom_call.1} parent=27 // pred_check
          %p165 = pneg %p55
        $region30: #{tpu_custom_call.1} parent=27 // pred_check_branch
          %167 = sbr.rel (%p165) target = $region32
        $region31: #{tpu_custom_call.1} parent=27 // pred_region
          %168 = dma.done %s161, 128
        $region32: #{tpu_custom_call.1} parent=27 // pred_fallthru
          _
        // Predicated region
        $region33: #{tpu_custom_call.1} parent=27 // pred_check
          %p169 = pneg %p76
        $region34: #{tpu_custom_call.1} parent=27 // pred_check_branch
          %171 = sbr.rel (%p169) target = $region36
        $region35: #{tpu_custom_call.1} parent=27 // pred_region
          %172 = dma.done [#allocation7], 16
        $region36: #{tpu_custom_call.1} parent=27 // pred_fallthru
          _
        %173 = sfence
        %s174 = sand.u32 %s42, 1
        %s175 = scalar_lea.sflag [#allocation5], %s174
        %s176 = sand.u32 %s42, 1
        %s177 = smul.addr %s176, 8
        %s178 = scalar_lea.vmem [#allocation4], %s177
        %p179 = pneg %p55
        %p180 = pneg %p52
        %p181 = pneg %p76
        %p182 = pneg %p73
        %p183 = pneg %p102
        %p184 = pneg %p99
        %s185 = sand.u32 %s89, 1
        %s186 = scalar_lea.sflag [#allocation6], %s185
        %s187 = sand.u32 %s89, 1
        %s188 = smul.addr %s187, 2
        %s189 = scalar_lea.vmem [#allocation9], %s188
        %v190 = vld [vmem:[%s164] sm:$0xff]
        %v192 = vcombine.high %v190, %v190
        %vm194 = vcmask 1043456
        %v195 = vsel %vm194, %v190, 0.0
        %v196 = vrot.slane %v195, 4
        %v197 = vadd.f32 %v195, %v196
        %v198 = vrot.slane %v197, 2
        %v199 = vadd.f32 %v197, %v198
        %v200 = vrot.slane %v199, 1
        %v201 = vadd.f32 %v199, %v200
        %v202 = vsel %vm194, %v192, 0.0
        %v203 = vrot.slane %v202, 4
        %v204 = vadd.f32 %v202, %v203
        %v205 = vrot.slane %v204, 2
        %v206 = vadd.f32 %v204, %v205
        %v207 = vrot.slane %v206, 1
        %v208 = vadd.f32 %v206, %v207
        %v209 = vsel %vm194, %v190, -inf
        %v210 = vrot.slane %v209, 4
        %v211 = vmax.f32 %v209, %v210
        %v212 = vrot.slane %v211, 2
        %v213 = vmax.f32 %v211, %v212
        %v214 = vrot.slane %v213, 1
        %v215 = vmax.f32 %v213, %v214
        %v216 = vsel %vm194, %v192, -inf
        %v217 = vrot.slane %v216, 4
        %v218 = vmax.f32 %v216, %v217
        %v219 = vrot.slane %v218, 2
        %v220 = vmax.f32 %v218, %v219
        %v221 = vrot.slane %v220, 1
        %v222 = vmax.f32 %v220, %v221
        %p223 = scmp.eq.s32.totalorder %s25, 0
        // Predicated region
        $region37: #{tpu_custom_call.1} parent=27 // pred_check
          %p224 = pneg %p223
        $region38: #{tpu_custom_call.1} parent=27 // pred_check_branch
          %226 = sbr.rel (%p224) target = $region40
        $region39: #{tpu_custom_call.1} parent=27 // pred_region
          %v227 = vlaneseq
          %vm228 = vcmp.ge.s32.totalorder %v227, 0
          %vm229 = vcmp.lt.s32.totalorder %v227, 256
          %vm230 = vmand %vm228, %vm229
          %231 = vst.msk [vmem:[#allocation2] sm:$0x3] %vm230, 0.0
          %232 = vst.msk [vmem:[#allocation3] sm:$0x3] %vm230, -inf
        $region40: #{tpu_custom_call.1} parent=27 // pred_fallthru
          _
        %v233 = vld [vmem:[#allocation2] sm:$0x3]
        %v236 = vcombine.low %v201, %v208
        %v238 = vunpack.c.l.s4 1966171168
        %v239 = vunpack.c.0.s8 %v238
        %v240 = vlaneseq
        %v241 = vshrl.u32 %v240, 7
        %v242 = vsub.s32 %v239, %v241
        %v243 = vrot.slane %v236, %v242
        %v245 = vunpack.c.l.s4 1966171168
        %v246 = vunpack.c.0.s8 %v245
        %v247 = vlaneseq
        %v248 = vshrl.u32 %v247, 7
        %v249 = vsub.s32 %v246, %v248
        %v250 = vrot.slane %v243, %v249
        %v252 = vadd.f32 %v233, %v250
        %v253 = vlaneseq
        %vm254 = vcmp.ge.s32.totalorder %v253, 0
        %vm255 = vcmp.lt.s32.totalorder %v253, 256
        %vm256 = vmand %vm254, %vm255
        %257 = vst.msk [vmem:[#allocation2] sm:$0x3] %vm256, %v252
        %v258 = vld [vmem:[#allocation3] sm:$0x3]
        %v261 = vcombine.low %v215, %v222
        %v263 = vunpack.c.l.s4 1966171168
        %v264 = vunpack.c.0.s8 %v263
        %v265 = vlaneseq
        %v266 = vshrl.u32 %v265, 7
        %v267 = vsub.s32 %v264, %v266
        %v268 = vrot.slane %v261, %v267
        %v270 = vunpack.c.l.s4 1966171168
        %v271 = vunpack.c.0.s8 %v270
        %v272 = vlaneseq
        %v273 = vshrl.u32 %v272, 7
        %v274 = vsub.s32 %v271, %v273
        %v275 = vrot.slane %v268, %v274
        %v277 = vmax.f32 %v258, %v275
        %278 = vst.msk [vmem:[#allocation3] sm:$0x3] %vm256, %v277
        // Predicated region
        $region41: #{tpu_custom_call.1} parent=27 // pred_check
          %p279 = pneg %p223
        $region42: #{tpu_custom_call.1} parent=27 // pred_check_branch
          %281 = sbr.rel (%p279) target = $region44
        $region43: #{tpu_custom_call.1} parent=27 // pred_region
          %v282 = vld [vmem:[#allocation2] sm:$0x3]
          %v283 = vmul.f32 %v282, 0.25
          %v284 = vld [vmem:[#allocation3] sm:$0x3]
          %v286 = vlaneseq
          %v287 = vshrl.u32 %v286, 7
          %v288 = vsub.s32 0, %v287
          %v289 = vrot.slane %v283, %v288
          %v290 = vlaneseq
          %v291 = vshrl.u32 %v290, 7
          %v292 = vsub.s32 1, %v291
          %v293 = vrot.slane %v283, %v292
          %294 = vrot.lane.b32.xlu0 %v289, 17
          %v295 = vpop.permute.xlu0 %294
          %296 = vrot.lane.b32.xlu0 %v293, 17
          %v297 = vpop.permute.xlu0 %296
          %vm298 = vcmask 138240
          %v299 = vsel %vm298, %v295, %v297
          %v303 = vsel %vm298, 0.0, %v295
          %v304 = vsel %vm298, %v297, 0.0
          %v306 = vlaneseq
          %v307 = vshrl.u32 %v306, 7
          %v308 = vsub.s32 0, %v307
          %v309 = vrot.slane %v284, %v308
          %v310 = vlaneseq
          %v311 = vshrl.u32 %v310, 7
          %v312 = vsub.s32 1, %v311
          %v313 = vrot.slane %v284, %v312
          %314 = vrot.lane.b32.xlu0 %v309, 17
          %v315 = vpop.permute.xlu0 %314
          %316 = vrot.lane.b32.xlu0 %v313, 17
          %v317 = vpop.permute.xlu0 %316
          %v318 = vsel %vm298, %v315, %v317
          %v322 = vsel %vm298, 0.0, %v315
          %v323 = vsel %vm298, %v317, 0.0
          %v324 = vlaneseq
          %v325 = vand.u32 %v324, 127
          %v326 = vadd.s32 %v325, 128
          %vm327 = vcmp.lt.s32.totalorder %v325, 0
          %v328 = vsub.s32 0, %v325
          %v329 = vsel %vm327, %v328, %v325
          %v330 = vshrl.u32 %v329, 4
          %v331 = vand.u32 %v329, 15
          %v332 = vsub.s32 0, %v331
          %v333 = vsel %vm327, %v332, %v331
          %vm334 = vcmp.lt.s32.totalorder %v326, 0
          %v335 = vsub.s32 0, %v326
          %v336 = vsel %vm334, %v335, %v326
          %v337 = vshrl.u32 %v336, 4
          %v338 = vand.u32 %v336, 15
          %v339 = vsub.s32 0, %v338
          %v340 = vsel %vm334, %v339, %v338
          %vm341 = vcmp.ne.s32.totalorder %v333, 0
          %vm342 = vcmp.ne.s32.totalorder %v340, 0
          %vm343 = vcmp.lt.s32.totalorder %v333, 0
          %vm344 = vcmp.lt.s32.totalorder %v340, 0
          %vm345 = vmand %vm343, %vm341
          %vm346 = vmand %vm344, %vm342
          %v347 = vadd.s32 %v333, 16
          %v348 = vadd.s32 %v340, 16
          %v349 = vsel %vm345, %v347, %v333
          %v350 = vsel %vm346, %v348, %v340
          %vm351 = vcmp.ge.s32.totalorder %v349, 1
          %vm352 = vcmp.ge.s32.totalorder %v350, 1
          %vm353 = vcmp.le.s32.totalorder %v349, 14
          %vm354 = vcmp.le.s32.totalorder %v350, 14
          %v355 = vsel %vm351, %v303, 0.0
          %v356 = vsel %vm352, %v299, 0.0
          %s357 = sld [smem:[#allocation8]]
          %v358 = vstv %s357
          %v359 = vmul.f32 %v358, %v355
          %v360 = vmul.f32 %v358, %v356
          %v361 = vadd.f32 %v359, 0.0
          %v362 = vadd.f32 %v360, 0.0
          %s363 = sld [smem:[#allocation8 + $0x1]]
          %v364 = vstv %s363
          %v365 = vmul.f32 %v364, %v303
          %v366 = vmul.f32 %v364, %v299
          %v367 = vmul.f32 %v364, %v304
          %371 = vrot.lane.b32.xlu0 %v365, 127
          %v372 = vpop.permute.xlu0 %371
          %373 = vrot.lane.b32.xlu0 %v366, 127
          %v374 = vpop.permute.xlu0 %373
          %375 = vrot.lane.b32.xlu0 %v367, 127
          %v376 = vpop.permute.xlu0 %375
          %vm377 = vcmask 1039360
          %v378 = vsel %vm377, %v372, %v374
          %v379 = vsel %vm377, %v374, %v376
          %v382 = vadd.f32 %v361, %v378
          %v383 = vadd.f32 %v362, %v379
          %386 = vrot.lane.b32.xlu0 %v303, 126
          %v387 = vpop.permute.xlu0 %386
          %388 = vrot.lane.b32.xlu0 %v299, 126
          %v389 = vpop.permute.xlu0 %388
          %390 = vrot.lane.b32.xlu0 %v304, 126
          %v391 = vpop.permute.xlu0 %390
          %vm392 = vcmask 1031168
          %v393 = vsel %vm392, %v387, %v389
          %v394 = vsel %vm392, %v389, %v391
          %v397 = vsel %vm353, %v393, 0.0
          %v398 = vsel %vm354, %v394, 0.0
          %s399 = sld [smem:[#allocation8 + $0x2]]
          %v400 = vstv %s399
          %v401 = vmul.f32 %v400, %v397
          %v402 = vmul.f32 %v400, %v398
          %v403 = vadd.f32 %v382, %v401
          %v404 = vadd.f32 %v383, %v402
          %405 = vrot.lane.b32.xlu0 %v303, 112
          %v406 = vpop.permute.xlu0 %405
          %407 = vrot.lane.b32.xlu0 %v299, 112
          %v408 = vpop.permute.xlu0 %407
          %409 = vrot.lane.b32.xlu0 %v304, 112
          %v410 = vpop.permute.xlu0 %409
          %vm411 = vcmask 916480
          %v412 = vsel %vm411, %v406, %v408
          %v413 = vsel %vm411, %v408, %v410
          %v416 = vsel %vm351, %v412, 0.0
          %v417 = vsel %vm352, %v413, 0.0
          %s418 = sld [smem:[#allocation8 + $0x3]]
          %v419 = vstv %s418
          %v420 = vmul.f32 %v419, %v416
          %v421 = vmul.f32 %v419, %v417
          %v422 = vadd.f32 %v403, %v420
          %v423 = vadd.f32 %v404, %v421
          %s424 = sld [smem:[#allocation8 + $0x4]]
          %v425 = vstv %s424
          %v426 = vmul.f32 %v425, %v303
          %v427 = vmul.f32 %v425, %v299
          %v428 = vmul.f32 %v425, %v304
          %432 = vrot.lane.b32.xlu0 %v426, 111
          %v433 = vpop.permute.xlu0 %432
          %434 = vrot.lane.b32.xlu0 %v427, 111
          %v435 = vpop.permute.xlu0 %434
          %436 = vrot.lane.b32.xlu0 %v428, 111
          %v437 = vpop.permute.xlu0 %436
          %vm438 = vcmask 908288
          %v439 = vsel %vm438, %v433, %v435
          %v440 = vsel %vm438, %v435, %v437
          %v443 = vadd.f32 %v422, %v439
          %v444 = vadd.f32 %v423, %v440
          %445 = vrot.lane.b32.xlu0 %v303, 110
          %v446 = vpop.permute.xlu0 %445
          %447 = vrot.lane.b32.xlu0 %v299, 110
          %v448 = vpop.permute.xlu0 %447
          %449 = vrot.lane.b32.xlu0 %v304, 110
          %v450 = vpop.permute.xlu0 %449
          %vm451 = vcmask 900096
          %v452 = vsel %vm451, %v446, %v448
          %v453 = vsel %vm451, %v448, %v450
          %v456 = vsel %vm353, %v452, 0.0
          %v457 = vsel %vm354, %v453, 0.0
          %s458 = sld [smem:[#allocation8 + $0x5]]
          %v459 = vstv %s458
          %v460 = vmul.f32 %v459, %v456
          %v461 = vmul.f32 %v459, %v457
          %v462 = vadd.f32 %v443, %v460
          %v463 = vadd.f32 %v444, %v461
          %464 = vrot.lane.b32.xlu0 %v303, 96
          %v465 = vpop.permute.xlu0 %464
          %466 = vrot.lane.b32.xlu0 %v299, 96
          %v467 = vpop.permute.xlu0 %466
          %468 = vrot.lane.b32.xlu0 %v304, 96
          %v469 = vpop.permute.xlu0 %468
          %vm470 = vcmask 785408
          %v471 = vsel %vm470, %v465, %v467
          %v472 = vsel %vm470, %v467, %v469
          %v475 = vsel %vm351, %v471, 0.0
          %v476 = vsel %vm352, %v472, 0.0
          %s477 = sld [smem:[#allocation8 + $0x6]]
          %v478 = vstv %s477
          %v479 = vmul.f32 %v478, %v475
          %v480 = vmul.f32 %v478, %v476
          %v481 = vadd.f32 %v462, %v479
          %v482 = vadd.f32 %v463, %v480
          %s483 = sld [smem:[#allocation8 + $0x7]]
          %v484 = vstv %s483
          %v485 = vmul.f32 %v484, %v303
          %v486 = vmul.f32 %v484, %v299
          %v487 = vmul.f32 %v484, %v304
          %491 = vrot.lane.b32.xlu0 %v485, 95
          %v492 = vpop.permute.xlu0 %491
          %493 = vrot.lane.b32.xlu0 %v486, 95
          %v494 = vpop.permute.xlu0 %493
          %495 = vrot.lane.b32.xlu0 %v487, 95
          %v496 = vpop.permute.xlu0 %495
          %vm497 = vcmask 777216
          %v498 = vsel %vm497, %v492, %v494
          %v499 = vsel %vm497, %v494, %v496
          %v502 = vadd.f32 %v481, %v498
          %v503 = vadd.f32 %v482, %v499
          %504 = vrot.lane.b32.xlu0 %v303, 94
          %v505 = vpop.permute.xlu0 %504
          %506 = vrot.lane.b32.xlu0 %v299, 94
          %v507 = vpop.permute.xlu0 %506
          %508 = vrot.lane.b32.xlu0 %v304, 94
          %v509 = vpop.permute.xlu0 %508
          %vm510 = vcmask 769024
          %v511 = vsel %vm510, %v505, %v507
          %v512 = vsel %vm510, %v507, %v509
          %v515 = vsel %vm353, %v511, 0.0
          %v516 = vsel %vm354, %v512, 0.0
          %s517 = sld [smem:[#allocation8 + $0x8]]
          %v518 = vstv %s517
          %v519 = vmul.f32 %v518, %v515
          %v520 = vmul.f32 %v518, %v516
          %v521 = vadd.f32 %v502, %v519
          %v522 = vadd.f32 %v503, %v520
          %v523 = vsel %vm351, %v322, 0.0
          %v524 = vsel %vm352, %v318, 0.0
          %s525 = sld [smem:[#allocation8 + $0x9]]
          %v526 = vstv %s525
          %v527 = vmul.f32 %v526, %v523
          %v528 = vmul.f32 %v526, %v524
          %v529 = vadd.f32 %v521, %v527
          %v530 = vadd.f32 %v522, %v528
          %s531 = sld [smem:[#allocation8 + $0xa]]
          %v532 = vstv %s531
          %v533 = vmul.f32 %v532, %v322
          %v534 = vmul.f32 %v532, %v318
          %v535 = vmul.f32 %v532, %v323
          %539 = vrot.lane.b32.xlu0 %v533, 127
          %v540 = vpop.permute.xlu0 %539
          %541 = vrot.lane.b32.xlu0 %v534, 127
          %v542 = vpop.permute.xlu0 %541
          %543 = vrot.lane.b32.xlu0 %v535, 127
          %v544 = vpop.permute.xlu0 %543
          %v545 = vsel %vm377, %v540, %v542
          %v546 = vsel %vm377, %v542, %v544
          %v549 = vadd.f32 %v529, %v545
          %v550 = vadd.f32 %v530, %v546
          %553 = vrot.lane.b32.xlu0 %v322, 126
          %v554 = vpop.permute.xlu0 %553
          %555 = vrot.lane.b32.xlu0 %v318, 126
          %v556 = vpop.permute.xlu0 %555
          %557 = vrot.lane.b32.xlu0 %v323, 126
          %v558 = vpop.permute.xlu0 %557
          %v559 = vsel %vm392, %v554, %v556
          %v560 = vsel %vm392, %v556, %v558
          %v563 = vsel %vm353, %v559, 0.0
          %v564 = vsel %vm354, %v560, 0.0
          %s565 = sld [smem:[#allocation8 + $0xb]]
          %v566 = vstv %s565
          %v567 = vmul.f32 %v566, %v563
          %v568 = vmul.f32 %v566, %v564
          %v569 = vadd.f32 %v549, %v567
          %v570 = vadd.f32 %v550, %v568
          %571 = vrot.lane.b32.xlu0 %v322, 112
          %v572 = vpop.permute.xlu0 %571
          %573 = vrot.lane.b32.xlu0 %v318, 112
          %v574 = vpop.permute.xlu0 %573
          %575 = vrot.lane.b32.xlu0 %v323, 112
          %v576 = vpop.permute.xlu0 %575
          %v577 = vsel %vm411, %v572, %v574
          %v578 = vsel %vm411, %v574, %v576
          %v581 = vsel %vm351, %v577, 0.0
          %v582 = vsel %vm352, %v578, 0.0
          %s583 = sld [smem:[#allocation8 + $0xc]]
          %v584 = vstv %s583
          %v585 = vmul.f32 %v584, %v581
          %v586 = vmul.f32 %v584, %v582
          %v587 = vadd.f32 %v569, %v585
          %v588 = vadd.f32 %v570, %v586
          %s589 = sld [smem:[#allocation8 + $0xd]]
          %v590 = vstv %s589
          %v591 = vmul.f32 %v590, %v322
          %v592 = vmul.f32 %v590, %v318
          %v593 = vmul.f32 %v590, %v323
          %597 = vrot.lane.b32.xlu0 %v591, 111
          %v598 = vpop.permute.xlu0 %597
          %599 = vrot.lane.b32.xlu0 %v592, 111
          %v600 = vpop.permute.xlu0 %599
          %601 = vrot.lane.b32.xlu0 %v593, 111
          %v602 = vpop.permute.xlu0 %601
          %v603 = vsel %vm438, %v598, %v600
          %v604 = vsel %vm438, %v600, %v602
          %v607 = vadd.f32 %v587, %v603
          %v608 = vadd.f32 %v588, %v604
          %609 = vrot.lane.b32.xlu0 %v322, 110
          %v610 = vpop.permute.xlu0 %609
          %611 = vrot.lane.b32.xlu0 %v318, 110
          %v612 = vpop.permute.xlu0 %611
          %613 = vrot.lane.b32.xlu0 %v323, 110
          %v614 = vpop.permute.xlu0 %613
          %v615 = vsel %vm451, %v610, %v612
          %v616 = vsel %vm451, %v612, %v614
          %v619 = vsel %vm353, %v615, 0.0
          %v620 = vsel %vm354, %v616, 0.0
          %s621 = sld [smem:[#allocation8 + $0xe]]
          %v622 = vstv %s621
          %v623 = vmul.f32 %v622, %v619
          %v624 = vmul.f32 %v622, %v620
          %v625 = vadd.f32 %v607, %v623
          %v626 = vadd.f32 %v608, %v624
          %627 = vrot.lane.b32.xlu0 %v322, 96
          %v628 = vpop.permute.xlu0 %627
          %629 = vrot.lane.b32.xlu0 %v318, 96
          %v630 = vpop.permute.xlu0 %629
          %631 = vrot.lane.b32.xlu0 %v323, 96
          %v632 = vpop.permute.xlu0 %631
          %v633 = vsel %vm470, %v628, %v630
          %v634 = vsel %vm470, %v630, %v632
          %v637 = vsel %vm351, %v633, 0.0
          %v638 = vsel %vm352, %v634, 0.0
          %s639 = sld [smem:[#allocation8 + $0xf]]
          %v640 = vstv %s639
          %v641 = vmul.f32 %v640, %v637
          %v642 = vmul.f32 %v640, %v638
          %v643 = vadd.f32 %v625, %v641
          %v644 = vadd.f32 %v626, %v642
          %s645 = sld [smem:[#allocation8 + $0x10]]
          %v646 = vstv %s645
          %v647 = vmul.f32 %v646, %v322
          %v648 = vmul.f32 %v646, %v318
          %v649 = vmul.f32 %v646, %v323
          %653 = vrot.lane.b32.xlu0 %v647, 95
          %v654 = vpop.permute.xlu0 %653
          %655 = vrot.lane.b32.xlu0 %v648, 95
          %v656 = vpop.permute.xlu0 %655
          %657 = vrot.lane.b32.xlu0 %v649, 95
          %v658 = vpop.permute.xlu0 %657
          %v659 = vsel %vm497, %v654, %v656
          %v660 = vsel %vm497, %v656, %v658
          %v663 = vadd.f32 %v643, %v659
          %v664 = vadd.f32 %v644, %v660
          %665 = vrot.lane.b32.xlu0 %v322, 94
          %v666 = vpop.permute.xlu0 %665
          %667 = vrot.lane.b32.xlu0 %v318, 94
          %v668 = vpop.permute.xlu0 %667
          %669 = vrot.lane.b32.xlu0 %v323, 94
          %v670 = vpop.permute.xlu0 %669
          %v671 = vsel %vm510, %v666, %v668
          %v672 = vsel %vm510, %v668, %v670
          %v675 = vsel %vm353, %v671, 0.0
          %v676 = vsel %vm354, %v672, 0.0
          %s677 = sld [smem:[#allocation8 + $0x11]]
          %v678 = vstv %s677
          %v679 = vmul.f32 %v678, %v675
          %v680 = vmul.f32 %v678, %v676
          %v681 = vadd.f32 %v663, %v679
          %v682 = vadd.f32 %v664, %v680
          %v683 = vxor.u32 %v681, 2147483648
          %v684 = vxor.u32 %v682, 2147483648
          %v685 = vmul.f32 %v683, 1.442695
          %v686 = vpow.pop %v685
          %v687 = vmul.f32 %v684, 1.442695
          %v688 = vpow.pop %v687
          %v689 = vadd.f32 %v686, 1.0
          %v690 = vadd.f32 %v688, 1.0
          %v691 = vrcp.pop %v689
          %v692 = vmul.f32 1.0, %v691
          %v693 = vrcp.pop %v690
          %v694 = vmul.f32 1.0, %v693
          %v697 = vcombine.low %v692, %v694
          %v699 = vunpack.c.l.s4 1966171168
          %v700 = vunpack.c.0.s8 %v699
          %v701 = vlaneseq
          %v702 = vshrl.u32 %v701, 7
          %v703 = vsub.s32 %v700, %v702
          %v704 = vrot.slane %v697, %v703
          %v706 = vunpack.c.l.s4 1966171168
          %v707 = vunpack.c.0.s8 %v706
          %v708 = vlaneseq
          %v709 = vshrl.u32 %v708, 7
          %v710 = vsub.s32 %v707, %v709
          %v711 = vrot.slane %v704, %v710
          %713 = vst.msk [vmem:[%s189] sm:$0x3] %vm256, %v711
        $region44: #{tpu_custom_call.1} parent=27 // pred_fallthru
          _
        %s714 = sand.u32 %s89, 1
        %s715 = scalar_lea.sflag [#allocation6], %s714
        %s716 = sand.u32 %s89, 1
        %s717 = smul.addr %s716, 2
        %s718 = scalar_lea.vmem [#allocation9], %s717
        // Predicated region
        $region45: #{tpu_custom_call.1} parent=27 // pred_check
          %p719 = pneg %p99
        $region46: #{tpu_custom_call.1} parent=27 // pred_check_branch
          %721 = sbr.rel (%p719) target = $region48
        $region47: #{tpu_custom_call.1} parent=27 // pred_region
          %s723 = ssub.s32 32, 32
          %724 = vsyncadd %s715, %s723
          %s725 = smul.addr %s24, 2
          %s726 = smul.addr %s725, 16
          %s727 = scalar_lea.hbm %s2, %s726
          %s729 = sshll.u32 %s718, 4
          %s730 = int_to_ptr.vmem [resolvable:$true] %s729
          %732 = dma.vmem_to_hbm [thread:$0]  %s730, 32, %s727, %s715
        $region48: #{tpu_custom_call.1} parent=27 // pred_fallthru
          _
      $region28: #{tpu_custom_call.1} parent=5 // pred_fallthru
        _
      %p733 = scmp.le.s32.totalorder 2, %s15
      // Predicated region
      $region49: #{tpu_custom_call.1} parent=5 // pred_check
        %p734 = pneg %p733
      $region50: #{tpu_custom_call.1} parent=5 // pred_check_branch
        %736 = sbr.rel (%p734) target = $region52
      $region51: #{tpu_custom_call.1} parent=5 // pred_region
        %s737 = ssub.s32 %s15, 2
        // Predicated region
        $region53: #{tpu_custom_call.1} parent=51 // pred_check
          %p738 = pneg %p105
        $region54: #{tpu_custom_call.1} parent=51 // pred_check_branch
          %740 = sbr.rel (%p738) target = $region56
        $region55: #{tpu_custom_call.1} parent=51 // pred_region
          %s741 = sand.u32 %s90, 1
          %s742 = scalar_lea.sflag [#allocation6], %s741
          %s743 = sand.u32 %s90, 1
          %s744 = smul.addr %s743, 2
          %s745 = scalar_lea.vmem [#allocation9], %s744
          %746 = dma.done %s742, 32
        $region56: #{tpu_custom_call.1} parent=51 // pred_fallthru
          _
      $region52: #{tpu_custom_call.1} parent=5 // pred_fallthru
        _
    $region6: #{tpu_custom_call.1} parent=1 // loop_footer
      %s19 = sadd.s32 1, %s15
    $region7: #{tpu_custom_call.1} parent=1 // loop_footer_branch
      %14 = sbr.rel target = $region3
    $region8: #{tpu_custom_call.1} parent=1 // loop_exit
      _
    %747 = vsyncpa [#allocation5], 1
    %s748 = scalar_lea.sflag [#allocation5], 1
    %749 = vsyncpa %s748, 1
    %750 = vsyncpa [#allocation6], 1
    %s751 = scalar_lea.sflag [#allocation6], 1
    %752 = vsyncpa %s751, 1
    %753 = vsyncpa [#allocation7], 1
    %s754 = scalar_lea.sflag [#allocation7], 1
    %755 = vsyncpa %s754, 1

</llo_original>
